<compile_context>
chip_gen: v7x
topology: tpu7x:2x2x1
jax: 0.10.0
libtpu: 0.0.40
codegen_flags: <defaults>
</compile_context>

<pallas_src>
import functools

import jax
import jax.numpy as jnp
from jax.experimental import pallas as pl
from jax.experimental.pallas import tpu as pltpu

LANE = 128          # TPU lane width; natural N/K alignment on all generations.
SUBLANE_BF16 = 16   # bf16 sublane packing granularity for the batch (sublane) dim.


def _round_up(n: int, m: int) -> int:
    return (n + m - 1) // m * m


def mlp_kernel(x_ref, w1_ref, b1_ref, w2_ref, b2_ref, o_ref):
    # Both matmuls + activations fused. x/w1/w2 arrive in bf16 (MXU operands),
    # accumulation and the elementwise epilogue stay in f32.
    h = jnp.dot(x_ref[...], w1_ref[...], preferred_element_type=jnp.float32) + b1_ref[...]
    h = jnp.tanh(h)
    # TODO(synk): on v6e/v7x the tanh/sigmoid epilogue could run in bf16 (bf16 VPU/EUP,
    # ~2x EUP throughput); kept in f32 so a single code path is also exact on v5e.
    y = jnp.dot(h.astype(jnp.bfloat16), w2_ref[...],
                preferred_element_type=jnp.float32) + b2_ref[...]
    # sigmoid(y) = 1 / (1 + exp(-y)); exp and reciprocal both land on the EUP slot.
    o_ref[...] = pl.reciprocal(1.0 + jnp.exp(-y), approx=True).astype(o_ref.dtype)


def prepare_params(w1, b1, w2, b2):
    """One-time (outside the hot path) lane-dense padding + bf16 cast of the weights.

    Zero padding is semantically inert: padded hidden columns are exactly 0 after
    tanh(0 + 0) and feed zero rows of w2; padded output columns are sliced off.
    """
    hidden = w1.shape[1]
    classes = w2.shape[1]
    h_pad = _round_up(hidden, LANE)
    c_pad = _round_up(classes, LANE)

    w1p = jnp.pad(w1, ((0, 0), (0, h_pad - hidden))).astype(jnp.bfloat16)
    b1p = jnp.pad(b1.reshape(1, -1), ((0, 0), (0, h_pad - hidden))).astype(jnp.float32)
    w2p = jnp.pad(w2, ((0, h_pad - hidden), (0, c_pad - classes))).astype(jnp.bfloat16)
    b2p = jnp.pad(b2.reshape(1, -1), ((0, 0), (0, c_pad - classes))).astype(jnp.float32)
    return (w1p, b1p, w2p, b2p), classes


def _vmem_ceiling_bytes() -> int:
    # Per-generation VMEM ceiling: ~80% of reported capacity
    # (v7x: 64 MiB/core -> ~51 MiB; v5e/v6e: 128 MiB -> ~102 MiB).
    try:
        cap = int(pltpu.get_tpu_info().vmem_capacity_bytes)
    except Exception:
        cap = 64 << 20  # conservative fallback
    return max(int(cap * 0.8), 16 << 20)


@functools.partial(jax.jit, static_argnames=("classes", "tile_b"))
def simple_neural_network(x, w1p, b1p, w2p, b2p, *, classes: int, tile_b: int = 256):
    """x: (B, input_size) f32; w1p: (input_size, h_pad) bf16; b1p: (1, h_pad) f32;
       w2p: (h_pad, c_pad) bf16; b2p: (1, c_pad) f32 -> (B, classes) f32."""
    B, in_size = x.shape
    h_pad = w1p.shape[1]
    c_pad = w2p.shape[1]

    # Batch tile: multiple of 16 (bf16 sublane packing). When the batch allows,
    # split into >=2 grid steps so "parallel" can shard across v7x's 2 TensorCores.
    b16 = _round_up(B, SUBLANE_BF16)
    tile_b = max(SUBLANE_BF16, min(tile_b, b16))
    if b16 >= 2 * SUBLANE_BF16:
        tile_b = min(tile_b, _round_up(b16 // 2, SUBLANE_BF16))
    b_pad = _round_up(B, tile_b)
    grid = (b_pad // tile_b,)

    # x: batch pad + bf16 cast folded into one wrapper op (halves DMA bytes).
    xp = jnp.pad(x, ((0, b_pad - B), (0, 0))).astype(jnp.bfloat16)

    # VMEM budget: double-buffered x/out tiles + single-buffered resident weights
    # + activation workspace, with 2x headroom, capped per generation.
    vmem_bytes = (
        2 * tile_b * in_size * 2          # x tiles (bf16, double-buffered)
        + 2 * tile_b * c_pad * 4          # out tiles (f32, double-buffered)
        + in_size * h_pad * 2             # w1 (bf16, single-buffered, resident)
        + h_pad * c_pad * 2               # w2 (bf16, single-buffered, resident)
        + (h_pad + c_pad) * 4             # biases (f32, resident)
        + 4 * tile_b * h_pad * 4          # activation / temp headroom
    )
    vmem_limit = int(min(max(2 * vmem_bytes, 8 << 20), _vmem_ceiling_bytes()))

    # TODO(synk): add a K-tiled fallback (grid over in_size + f32 VMEM accumulator
    # with pl.when init/finalize) if in_size*h_pad*2 bytes ever exceeds ~1/3 of the
    # per-core VMEM budget (v7x, very large input_size); resident-w1 is kept here
    # as the small/medium-model fast path.
    resident = pl.Buffered(1)  # invariant block index -> single buffer suffices

    out_padded = pl.pallas_call(
        mlp_kernel,
        out_shape=jax.ShapeDtypeStruct((b_pad, c_pad), jnp.float32),
        grid_spec=pltpu.PrefetchScalarGridSpec(
            num_scalar_prefetch=0,
            grid=grid,
            in_specs=[
                pl.BlockSpec((tile_b, in_size), lambda i: (i, 0)),                      # x tiles
                pl.BlockSpec((in_size, h_pad), lambda i: (0, 0), pipeline_mode=resident),  # w1
                pl.BlockSpec((1, h_pad),       lambda i: (0, 0), pipeline_mode=resident),  # b1
                pl.BlockSpec((h_pad, c_pad),   lambda i: (0, 0), pipeline_mode=resident),  # w2
                pl.BlockSpec((1, c_pad),       lambda i: (0, 0), pipeline_mode=resident),  # b2
            ],
            out_specs=pl.BlockSpec((tile_b, c_pad), lambda i: (i, 0)),  # lane-dense store
        ),
        compiler_params=pltpu.CompilerParams(
            dimension_semantics=("parallel",),   # shard batch grid across TCs (v7x)
            vmem_limit_bytes=vmem_limit,
        ),
    )(xp, w1p, b1p, w2p, b2p)

    return out_padded[:B, :classes]


def init_params(key, input_size, hidden_size, class_count, dtype=jnp.float32):
    # Deterministic init mimicking torch.nn.Linear (uniform(-1/sqrt(fan_in), 1/sqrt(fan_in))).
    k1, k2, k3, k4 = jax.random.split(key, 4)
    bound1 = 1.0 / (input_size ** 0.5)
    bound2 = 1.0 / (hidden_size ** 0.5)
    w1 = jax.random.uniform(k1, (input_size, hidden_size), dtype, -bound1, bound1)
    b1 = jax.random.uniform(k2, (1, hidden_size), dtype, -bound1, bound1)
    w2 = jax.random.uniform(k3, (hidden_size, class_count), dtype, -bound2, bound2)
    b2 = jax.random.uniform(k4, (1, class_count), dtype, -bound2, bound2)
    return w1, b1, w2, b2


if __name__ == "__main__":
    batch = 8
    input_size = 32
    hidden_size = 32
    class_count = 8

    key = jax.random.PRNGKey(0)
    kx, kp = jax.random.split(key)
    x = jax.random.normal(kx, (batch, input_size), jnp.float32)
    w1, b1, w2, b2 = init_params(kp, input_size, hidden_size, class_count)

    # One-time weight prep (padding + bf16 cast) outside the per-call hot path.
    (w1p, b1p, w2p, b2p), n_classes = prepare_params(w1, b1, w2, b2)

    out = simple_neural_network(x, w1p, b1p, w2p, b2p, classes=n_classes)
    out = jax.block_until_ready(out)
    assert out.shape == (batch, class_count)

    # Reference in plain JAX, mirroring the kernel's bf16 MXU operands
    # (f32 accumulate, f32 epilogue).
    xb = x.astype(jnp.bfloat16).astype(jnp.float32)
    w1b = w1.astype(jnp.bfloat16).astype(jnp.float32)
    w2b = w2.astype(jnp.bfloat16).astype(jnp.float32)
    h_ref = jnp.tanh(xb @ w1b + b1)
    hb = h_ref.astype(jnp.bfloat16).astype(jnp.float32)
    ref = jax.nn.sigmoid(hb @ w2b + b2)
    assert jnp.allclose(out, ref, atol=3e-3, rtol=3e-3), float(jnp.max(jnp.abs(out - ref)))

    # Loose sanity check against the full-precision forward pass.
    ref_f32 = jax.nn.sigmoid(jnp.tanh(x @ w1 + b1) @ w2 + b2)
    assert jnp.allclose(out, ref_f32, atol=3e-2, rtol=3e-2)

    print("KERNEL_OK")
</pallas_src>

<mosaic_0001>
module attributes {stable_mosaic.version = 11 : i64} {
  func.func @mlp_kernel(%arg0: i32, %arg1: memref<16x32xbf16, #tpu.memory_space<vmem>>, %arg2: memref<32x128xbf16, #tpu.memory_space<vmem>>, %arg3: memref<1x128xf32, #tpu.memory_space<vmem>>, %arg4: memref<128x128xbf16, #tpu.memory_space<vmem>>, %arg5: memref<1x128xf32, #tpu.memory_space<vmem>>, %arg6: memref<16x128xf32, #tpu.memory_space<vmem>>) attributes {dimension_semantics = [#tpu.dimension_semantics<parallel>], iteration_bounds = array<i64: 1>, scalar_prefetch = 0 : i64, scratch_operands = 0 : i64, tpu.core_type = #tpu.core_type<tc>, window_params = [{transform_indices = @transform_0, window_bounds = array<i64: 16, 32>}, {pipeline_mode = #tpu.pipeline_mode<synchronous>, transform_indices = @transform_1, window_bounds = array<i64: 32, 128>}, {pipeline_mode = #tpu.pipeline_mode<synchronous>, transform_indices = @transform_2, window_bounds = array<i64: 1, 128>}, {pipeline_mode = #tpu.pipeline_mode<synchronous>, transform_indices = @transform_3, window_bounds = array<i64: 128, 128>}, {pipeline_mode = #tpu.pipeline_mode<synchronous>, transform_indices = @transform_4, window_bounds = array<i64: 1, 128>}, {transform_indices = @transform_5, window_bounds = array<i64: 16, 128>}]} {
    %c0 = arith.constant 0 : index
    %c0_0 = arith.constant 0 : index
    %0 = vector.load %arg1[%c0, %c0_0] : memref<16x32xbf16, #tpu.memory_space<vmem>>, vector<16x32xbf16>
    %c0_1 = arith.constant 0 : index
    %c0_2 = arith.constant 0 : index
    %1 = vector.load %arg2[%c0_1, %c0_2] : memref<32x128xbf16, #tpu.memory_space<vmem>>, vector<32x128xbf16>
    %cst = arith.constant dense<0.000000e+00> : vector<16x128xf32>
    %2 = tpu.matmul %0, %1, %cst {dimension_numbers = #tpu.dot_dimension_numbers<[1], [0], [0], [1], [0, 0, 1, 1], [], []>} : vector<16x32xbf16>, vector<32x128xbf16>, vector<16x128xf32> -> vector<16x128xf32>
    %c0_3 = arith.constant 0 : index
    %c0_4 = arith.constant 0 : index
    %3 = vector.load %arg3[%c0_3, %c0_4] : memref<1x128xf32, #tpu.memory_space<vmem>>, vector<1x128xf32>
    %4 = vector.broadcast %3 : vector<1x128xf32> to vector<16x128xf32>
    %5 = arith.addf %2, %4 : vector<16x128xf32>
    %6 = math.tanh %5 : vector<16x128xf32>
    %7 = arith.truncf %6 : vector<16x128xf32> to vector<16x128xbf16>
    %c0_5 = arith.constant 0 : index
    %c0_6 = arith.constant 0 : index
    %8 = vector.load %arg4[%c0_5, %c0_6] : memref<128x128xbf16, #tpu.memory_space<vmem>>, vector<128x128xbf16>
    %cst_7 = arith.constant dense<0.000000e+00> : vector<16x128xf32>
    %9 = tpu.matmul %7, %8, %cst_7 {dimension_numbers = #tpu.dot_dimension_numbers<[1], [0], [0], [1], [0, 0, 1, 1], [], []>} : vector<16x128xbf16>, vector<128x128xbf16>, vector<16x128xf32> -> vector<16x128xf32>
    %c0_8 = arith.constant 0 : index
    %c0_9 = arith.constant 0 : index
    %10 = vector.load %arg5[%c0_8, %c0_9] : memref<1x128xf32, #tpu.memory_space<vmem>>, vector<1x128xf32>
    %11 = vector.broadcast %10 : vector<1x128xf32> to vector<16x128xf32>
    %12 = arith.addf %9, %11 : vector<16x128xf32>
    %cst_10 = arith.constant 0.000000e+00 : f32
    %13 = vector.broadcast %cst_10 : f32 to vector<16x128xf32>
    %14 = arith.subf %13, %12 : vector<16x128xf32>
    %15 = math.exp %14 : vector<16x128xf32>
    %cst_11 = arith.constant 1.000000e+00 : f32
    %16 = vector.broadcast %cst_11 : f32 to vector<16x128xf32>
    %17 = arith.addf %16, %15 : vector<16x128xf32>
    %18 = tpu.reciprocal %17 {approx = true} : vector<16x128xf32> -> vector<16x128xf32>
    %c0_12 = arith.constant 0 : index
    %c0_13 = arith.constant 0 : index
    %19 = vector.load %arg6[%c0_12, %c0_13] : memref<16x128xf32, #tpu.memory_space<vmem>>, vector<16x128xf32>
    tpu.vector_store %arg6[%c0_12, %c0_13], %18 {strides = array<i32>} : memref<16x128xf32, #tpu.memory_space<vmem>>, vector<16x128xf32>,
    return
  }
  func.func @transform_0(%arg0: i32) -> (i32, i32) {
    %c0_i32 = arith.constant 0 : i32
    %c0_i32_0 = arith.constant 0 : i32
    return %arg0, %c0_i32 : i32, i32
  }
  func.func @transform_1(%arg0: i32) -> (i32, i32) {
    %c0_i32 = arith.constant 0 : i32
    %c0_i32_0 = arith.constant 0 : i32
    %c0_i32_1 = arith.constant 0 : i32
    return %c0_i32, %c0_i32_0 : i32, i32
  }
  func.func @transform_2(%arg0: i32) -> (i32, i32) {
    %c0_i32 = arith.constant 0 : i32
    %c0_i32_0 = arith.constant 0 : i32
    %c0_i32_1 = arith.constant 0 : i32
    return %c0_i32, %c0_i32_0 : i32, i32
  }
  func.func @transform_3(%arg0: i32) -> (i32, i32) {
    %c0_i32 = arith.constant 0 : i32
    %c0_i32_0 = arith.constant 0 : i32
    %c0_i32_1 = arith.constant 0 : i32
    return %c0_i32, %c0_i32_0 : i32, i32
  }
  func.func @transform_4(%arg0: i32) -> (i32, i32) {
    %c0_i32 = arith.constant 0 : i32
    %c0_i32_0 = arith.constant 0 : i32
    %c0_i32_1 = arith.constant 0 : i32
    return %c0_i32, %c0_i32_0 : i32, i32
  }
  func.func @transform_5(%arg0: i32) -> (i32, i32) {
    %c0_i32 = arith.constant 0 : i32
    %c0_i32_0 = arith.constant 0 : i32
    return %arg0, %c0_i32 : i32, i32
  }
}

</mosaic_0001>

<llo_original>
// kernel: simple_neural_network.1
$region0: #{simple_neural_network.1}
  #allocation0 [shape = 'u32[]', space=smem, size = 0x4, offset = 0x4, fixed_abs, tag = 'smem constant byte address 0x4 - core index']
  #allocation1 [shape = 'u32[144,128]{1,0:T(1,128)}', space=vmem, size = 0x12000, scoped, tag = 'internal scratch']
  %s0 = inlined_call_operand.vmem [shape: bf16[16,32], index: 0, kind: input, shape index: {}]
  %s1 = inlined_call_operand.vmem [shape: bf16[32,128], index: 1, kind: input, shape index: {}]
  %s2 = inlined_call_operand.vmem [shape: f32[1,128], index: 2, kind: input, shape index: {}]
  %s3 = inlined_call_operand.hbm [shape: bf16[128,128], index: 3, kind: input, shape index: {}]
  %s4 = inlined_call_operand.vmem [shape: f32[1,128], index: 4, kind: input, shape index: {}]
  %s5 = inlined_call_operand.vmem [shape: f32[16,128], index: 5, kind: output, shape index: {}]
  %s6 = sld [smem:[#allocation0]]
  $region34: #{simple_neural_network.1} parent=0
    _
  %s8 = ssub.s32 1, %s6
  %s9 = scalar_select 0, %s8, %s6
  $region1: #{simple_neural_network.1} parent=0
    #allocation2 [shape = 'u8[32768]{0}', space=vmem, size = 0x8000, scoped, tag = 'input window, operand 3, single buffered']
    #allocation3 [shape = 's32[1]{0}', space=sflag, size = 0x4, scoped, tag = 'scoped memory for simple_neural_network.1']
    %10 = vsyncpa [#allocation3], 0
    // Predicated region
    $region2: #{simple_neural_network.1} parent=1 // pred_check
      _
    $region3: #{simple_neural_network.1} parent=1 // pred_check_branch
      %12 = sbr.rel (0) target = $region5
    $region4: #{simple_neural_network.1} parent=1 // pred_region
      _
    $region5: #{simple_neural_network.1} parent=1 // pred_fallthru
      _
    // Predicated region
    $region6: #{simple_neural_network.1} parent=1 // pred_check
      _
    $region7: #{simple_neural_network.1} parent=1 // pred_check_branch
      %14 = sbr.rel (0) target = $region9
    $region8: #{simple_neural_network.1} parent=1 // pred_region
      _
    $region9: #{simple_neural_network.1} parent=1 // pred_fallthru
      _
    // Predicated region
    $region10: #{simple_neural_network.1} parent=1 // pred_check
      _
    $region11: #{simple_neural_network.1} parent=1 // pred_check_branch
      %16 = sbr.rel (0) target = $region13
    $region12: #{simple_neural_network.1} parent=1 // pred_region
      _
    $region13: #{simple_neural_network.1} parent=1 // pred_fallthru
      _
    // Predicated region
    $region14: #{simple_neural_network.1} parent=1 // pred_check
      _
    $region15: #{simple_neural_network.1} parent=1 // pred_check_branch
      %18 = sbr.rel (0) target = $region17
    $region16: #{simple_neural_network.1} parent=1 // pred_region
      %s20 = ssub.s32 1024, 1024
      %21 = vsyncadd [#allocation3], %s20
      %s22 = sshll.u32 [#allocation2], 4
      %s23 = int_to_ptr.vmem [resolvable:$true] %s22
      %28 = dma.hbm_to_vmem [thread:$0]  %s3, 1024, %s23, [#allocation3], 64, 64, 4
    $region17: #{simple_neural_network.1} parent=1 // pred_fallthru
      _
    // Predicated region
    $region18: #{simple_neural_network.1} parent=1 // pred_check
      _
    $region19: #{simple_neural_network.1} parent=1 // pred_check_branch
      %30 = sbr.rel (0) target = $region21
    $region20: #{simple_neural_network.1} parent=1 // pred_region
      _
    $region21: #{simple_neural_network.1} parent=1 // pred_fallthru
      _
    // Predicated region
    $region22: #{simple_neural_network.1} parent=1 // pred_check
      _
    $region23: #{simple_neural_network.1} parent=1 // pred_check_branch
      %32 = sbr.rel (0) target = $region25
    $region24: #{simple_neural_network.1} parent=1 // pred_region
      %33 = dma.done [#allocation3], 1024
    $region25: #{simple_neural_network.1} parent=1 // pred_fallthru
      _
    %v35 = vld [vmem:[%s0] sm:$0xf]
    %v36 = vld [vmem:[%s0 + $0x4] sm:$0xf]
    %v37 = vld [vmem:[%s1] sm:$0xf]
    %v38 = vld [vmem:[%s1 + $0x4] sm:$0xf]
    %v39 = vld [vmem:[%s1 + $0x8] sm:$0xf]
    %v40 = vld [vmem:[%s1 + $0xc] sm:$0xf]
    %v41 = vld [vmem:[%s2] sm:$0x1]
    %v43 = vlaneseq
    %v44 = vshrl.u32 %v43, 7
    %v45 = vsub.s32 0, %v44
    %v46 = vrot.slane %v41, %v45
    %v50 = vunpack.c.l.b16 %v35
    %v51 = vunpack.c.l.b16 %v36
    %v52 = vpack.c.b16 %v51, %v50
    %v57 = vunpack.c.l.b16 %v37
    %v58 = vunpack.c.l.b16 %v38
    %v59 = vunpack.c.l.b16 %v39
    %v60 = vunpack.c.l.b16 %v40
    %v61 = vpack.c.b16 %v58, %v57
    %v62 = vpack.c.b16 %v60, %v59
    %vm65 = vcmask 261120
    %v67 = vsel %vm65, %v52, 0
    %69 = vmatprep.subr.bf16.mxu0 0
    %70 = vmatpush1.bf16.msra.mxu0 %v61
    %71 = vmatprep.subr.bf16.mxu0 0
    %72 = vmatpush1.bf16.msra.mxu0 %v62
    %73 = vmatprep.subr.bf16.mxu0 0
    %74 = vmatpush1.bf16.msra.mxu0 0
    %75 = vmatprep.subr.bf16.mxu0 0
    %76 = vmatpush1.bf16.msra.mxu0 0
    %77 = vmatprep.subr.bf16.mxu0 0
    %78 = vmatpush1.bf16.msra.mxu0 0
    %79 = vmatprep.subr.bf16.mxu0 0
    %80 = vmatpush1.bf16.msra.mxu0 0
    %81 = vmatprep.subr.bf16.mxu0 0
    %82 = vmatpush1.bf16.msra.mxu0 0
    %83 = vmatprep.subr.bf16.mxu0 0
    %84 = vmatpush1.bf16.msra.mxu0 0
    %85 = vmatprep.subr.bf16.mxu0 0
    %86 = vmatpush1.bf16.msra.mxu0 0
    %87 = vmatprep.subr.bf16.mxu0 0
    %88 = vmatpush1.bf16.msra.mxu0 0
    %89 = vmatprep.subr.bf16.mxu0 0
    %90 = vmatpush1.bf16.msra.mxu0 0
    %91 = vmatprep.subr.bf16.mxu0 0
    %92 = vmatpush1.bf16.msra.mxu0 0
    %93 = vmatprep.subr.bf16.mxu0 0
    %94 = vmatpush1.bf16.msra.mxu0 0
    %95 = vmatprep.subr.bf16.mxu0 0
    %96 = vmatpush1.bf16.msra.mxu0 0
    %97 = vmatprep.subr.bf16.mxu0 0
    %98 = vmatpush1.bf16.msra.mxu0 0
    %99 = vmatprep.subr.bf16.mxu0 0
    %100 = vmatpush1.bf16.msra.mxu0 0
    %101 = vmatprep.mubr.bf16.mxu0 0
    %102 = vmatmul.mubr.bf16.gmra.mrb[0].mxu0 %v67
    %v103 = vpop.f32.mrb[0].mxu0
    %v104 = vadd.f32 %v46, %v103
    %v105 = vpop.f32.mrb[0].mxu0
    %v106 = vpop.f32.mrb[0].mxu0
    %v107 = vadd.f32 %v46, %v106
    %v108 = vpop.f32.mrb[0].mxu0
    %109 = vdwg.mxu0
    %v110 = vtanh.pop %v104
    %v111 = vtanh.pop %v107
    %v112 = vpack.c.bf16 %v111, %v110
    %v113 = vld [vmem:[#allocation2] sm:$0xf]
    %v114 = vld [vmem:[#allocation2 + $0x4] sm:$0xf]
    %v115 = vld [vmem:[#allocation2 + $0x8] sm:$0xf]
    %v116 = vld [vmem:[#allocation2 + $0xc] sm:$0xf]
    %v117 = vld [vmem:[#allocation2 + $0x10] sm:$0xf]
    %v118 = vld [vmem:[#allocation2 + $0x14] sm:$0xf]
    %v119 = vld [vmem:[#allocation2 + $0x18] sm:$0xf]
    %v120 = vld [vmem:[#allocation2 + $0x1c] sm:$0xf]
    %v121 = vld [vmem:[#allocation2 + $0x20] sm:$0xf]
    %v122 = vld [vmem:[#allocation2 + $0x24] sm:$0xf]
    %v123 = vld [vmem:[#allocation2 + $0x28] sm:$0xf]
    %v124 = vld [vmem:[#allocation2 + $0x2c] sm:$0xf]
    %v125 = vld [vmem:[#allocation2 + $0x30] sm:$0xf]
    %v126 = vld [vmem:[#allocation2 + $0x34] sm:$0xf]
    %v127 = vld [vmem:[#allocation2 + $0x38] sm:$0xf]
    %v128 = vld [vmem:[#allocation2 + $0x3c] sm:$0xf]
    %v129 = vld [vmem:[%s4] sm:$0x1]
    %v131 = vlaneseq
    %v132 = vshrl.u32 %v131, 7
    %v133 = vsub.s32 0, %v132
    %v134 = vrot.slane %v129, %v133
    %v152 = vunpack.c.l.b16 %v113
    %v153 = vunpack.c.l.b16 %v114
    %v154 = vunpack.c.l.b16 %v115
    %v155 = vunpack.c.l.b16 %v116
    %v156 = vunpack.c.l.b16 %v117
    %v157 = vunpack.c.l.b16 %v118
    %v158 = vunpack.c.l.b16 %v119
    %v159 = vunpack.c.l.b16 %v120
    %v160 = vunpack.c.l.b16 %v121
    %v161 = vunpack.c.l.b16 %v122
    %v162 = vunpack.c.l.b16 %v123
    %v163 = vunpack.c.l.b16 %v124
    %v164 = vunpack.c.l.b16 %v125
    %v165 = vunpack.c.l.b16 %v126
    %v166 = vunpack.c.l.b16 %v127
    %v167 = vunpack.c.l.b16 %v128
    %v168 = vpack.c.b16 %v153, %v152
    %v169 = vpack.c.b16 %v155, %v154
    %v170 = vpack.c.b16 %v157, %v156
    %v171 = vpack.c.b16 %v159, %v158
    %v172 = vpack.c.b16 %v161, %v160
    %v173 = vpack.c.b16 %v163, %v162
    %v174 = vpack.c.b16 %v165, %v164
    %v175 = vpack.c.b16 %v167, %v166
    %184 = vmatprep.subr.bf16.mxu0 0
    %185 = vmatpush1.bf16.msra.mxu0 %v168
    %186 = vmatprep.subr.bf16.mxu0 0
    %187 = vmatpush1.bf16.msra.mxu0 %v169
    %188 = vmatprep.subr.bf16.mxu0 0
    %189 = vmatpush1.bf16.msra.mxu0 %v170
    %190 = vmatprep.subr.bf16.mxu0 0
    %191 = vmatpush1.bf16.msra.mxu0 %v171
    %192 = vmatprep.subr.bf16.mxu0 0
    %193 = vmatpush1.bf16.msra.mxu0 %v172
    %194 = vmatprep.subr.bf16.mxu0 0
    %195 = vmatpush1.bf16.msra.mxu0 %v173
    %196 = vmatprep.subr.bf16.mxu0 0
    %197 = vmatpush1.bf16.msra.mxu0 %v174
    %198 = vmatprep.subr.bf16.mxu0 0
    %199 = vmatpush1.bf16.msra.mxu0 %v175
    %200 = vmatprep.subr.bf16.mxu0 0
    %201 = vmatpush1.bf16.msra.mxu0 0
    %202 = vmatprep.subr.bf16.mxu0 0
    %203 = vmatpush1.bf16.msra.mxu0 0
    %204 = vmatprep.subr.bf16.mxu0 0
    %205 = vmatpush1.bf16.msra.mxu0 0
    %206 = vmatprep.subr.bf16.mxu0 0
    %207 = vmatpush1.bf16.msra.mxu0 0
    %208 = vmatprep.subr.bf16.mxu0 0
    %209 = vmatpush1.bf16.msra.mxu0 0
    %210 = vmatprep.subr.bf16.mxu0 0
    %211 = vmatpush1.bf16.msra.mxu0 0
    %212 = vmatprep.subr.bf16.mxu0 0
    %213 = vmatpush1.bf16.msra.mxu0 0
    %214 = vmatprep.subr.bf16.mxu0 0
    %215 = vmatpush1.bf16.msra.mxu0 0
    %216 = vmatprep.mubr.bf16.mxu0 0
    %217 = vmatmul.mubr.bf16.gmra.mrb[0].mxu0 %v112
    %v218 = vpop.f32.mrb[0].mxu0
    %v219 = vadd.f32 %v134, %v218
    %v220 = vpop.f32.mrb[0].mxu0
    %v221 = vpop.f32.mrb[0].mxu0
    %v222 = vadd.f32 %v134, %v221
    %v223 = vpop.f32.mrb[0].mxu0
    %224 = vdwg.mxu0
    %v225 = vsub.f32 0.0, %v219
    %v226 = vsub.f32 0.0, %v222
    %v227 = vmul.f32 %v225, 1.442695
    %v228 = vpow.pop %v227
    %v229 = vmul.f32 %v226, 1.442695
    %v230 = vpow.pop %v229
    %v231 = vadd.f32 %v228, 1.0
    %v232 = vadd.f32 %v230, 1.0
    %v233 = vrcp.pop %v231
    %v234 = vrcp.pop %v232
    %235 = vst [vmem:[%s5] sm:$0xff] %v233
    %236 = vst [vmem:[%s5 + $0x8] sm:$0xff] %v234
    // Predicated region
    $region26: #{simple_neural_network.1} parent=1 // pred_check
      _
    $region27: #{simple_neural_network.1} parent=1 // pred_check_branch
      %238 = sbr.rel (0) target = $region29
    $region28: #{simple_neural_network.1} parent=1 // pred_region
      _
    $region29: #{simple_neural_network.1} parent=1 // pred_fallthru
      _
    // Predicated region
    $region30: #{simple_neural_network.1} parent=1 // pred_check
      _
    $region31: #{simple_neural_network.1} parent=1 // pred_check_branch
      %240 = sbr.rel (0) target = $region33
    $region32: #{simple_neural_network.1} parent=1 // pred_region
      _
    $region33: #{simple_neural_network.1} parent=1 // pred_fallthru
      _
    %241 = vsyncpa [#allocation3], 1

</llo_original>
